<compile_context>
chip_gen: v7x
topology: tpu7x:2x2x1
jax: 0.10.0
libtpu: 0.0.40
codegen_flags: <defaults>
</compile_context>

<pallas_src>
import functools
import math

import jax
import jax.numpy as jnp
from jax.experimental import pallas as pl
from jax.experimental.pallas import tpu as pltpu


def _cdiv(a, b):
    return -(-a // b)


def _round_up(a, m):
    return _cdiv(a, m) * m


def _vmem_capacity_bytes():
    """Physical VMEM of the attached TPU; conservative fallback if unknown."""
    try:
        info = pltpu.get_tpu_info()
        cap = int(getattr(info, "vmem_capacity_bytes", 0) or 0)
        if cap > 0:
            return cap
    except Exception:
        pass
    return 64 * 1024 * 1024  # v7x-sized conservative default


# ---------------------------------------------------------------------------
# Kernel bodies
# ---------------------------------------------------------------------------
def _swap_minor_kernel(in_ref, out_ref):
    """Swap the last two (sublane/lane) dims of the block (batched XLU transpose)."""
    x = in_ref[...]
    h, w = x.shape[-2], x.shape[-1]
    # Merge leading dims (layout-trivial) -> canonical batched 2-D transpose.
    y = jnp.swapaxes(x.reshape((-1, h, w)), -2, -1)
    out_ref[...] = y.reshape(out_ref.shape)


def _swap_sublane_leading_kernel(in_ref, out_ref, *, d0, unroll, mid_axes):
    """Swap input axis `d0` (leading) with the second-minor axis.

    The lane dim is untouched, so the in-block swap is done as `unroll`
    strided VMEM slab copies (plain Ref-slice assignments, no cross-lane
    work); this hides under the block DMAs.
    """
    ndim = len(in_ref.shape)
    for i in range(unroll):
        in_idx = [slice(None)] * ndim
        out_idx = [slice(None)] * ndim
        in_idx[d0] = i
        out_idx[ndim - 2] = i
        for m in mid_axes:
            in_idx[m] = 0
            out_idx[m] = 0
        out_ref[tuple(out_idx)] = in_ref[tuple(in_idx)]


# ---------------------------------------------------------------------------
# Single-pass transpose where the larger swapped dim is one of the last two.
# ---------------------------------------------------------------------------
def _transpose_core(x, d0, d1, block_budget_bytes):
    ndim = x.ndim
    assert 0 <= d0 < d1 and d1 in (ndim - 2, ndim - 1)
    shape = x.shape
    itemsize = x.dtype.itemsize

    cap = _vmem_capacity_bytes()
    vmem_limit = min(int(0.75 * cap), 96 * 1024 * 1024)
    if block_budget_bytes is None:
        # ~9.6 MiB blocks on v7x (64 MiB VMEM), ~19 MiB on v5e/v6e (128 MiB).
        block_budget_bytes = max(1 << 20, vmem_limit // 5)
    budget_elems = max(1, block_budget_bytes // itemsize)

    perm = list(range(ndim))
    perm[d0], perm[d1] = perm[d1], perm[d0]
    perm = tuple(perm)
    out_shape = tuple(shape[p] for p in perm)

    lane_align = 128
    sublane_align = max(8, 32 // max(1, itemsize))  # 8 f32 / 16 bf16 / 32 int8

    # Alignment each axis needs if its block is smaller than the full dim.
    align = [1] * ndim

    def _bump(a, m):
        align[a] = align[a] * m // math.gcd(align[a], m)

    _bump(ndim - 1, lane_align)            # input lane
    _bump(ndim - 2, sublane_align)         # input sublane
    _bump(perm[ndim - 1], lane_align)      # axis that becomes the output lane
    _bump(perm[ndim - 2], sublane_align)   # axis that becomes the output sublane

    constrained = sorted({ndim - 1, ndim - 2, perm[ndim - 1], perm[ndim - 2]})
    batch_axes = [a for a in range(ndim) if a not in constrained]

    is_minor_swap = (d0 == ndim - 2 and d1 == ndim - 1)
    mid_axes = [] if is_minor_swap else list(range(d0 + 1, ndim - 2))

    # --- initial block: full on constrained axes, 1 on batch/mid axes -------
    block = list(shape)
    for a in batch_axes:
        block[a] = 1
    if not is_minor_swap and shape[d0] > 32:
        block[d0] = 32  # bounded unroll; multiple of 8/16/32 sublane packing

    def _slab_elems():
        return math.prod(block)

    # --- shrink constrained (minor-feeding) axes until the slab fits --------
    while _slab_elems() > budget_elems:
        cands = [a for a in constrained if block[a] > align[a]]
        if not cands:
            break
        a = max(cands, key=lambda c: block[c])
        block[a] = max(align[a], _round_up(block[a] // 2, align[a]))

    # --- grow pure batch axes (innermost first) within the budget -----------
    growable = [a for a in batch_axes if a not in mid_axes]
    for a in reversed(growable):
        other = _slab_elems() // block[a]
        cap_a = max(1, budget_elems // max(1, other))
        block[a] = min(shape[a], cap_a)

    # --- grid (non-divisor blocks allowed; ragged edge blocks are clipped) --
    grid_axes = [a for a in range(ndim) if block[a] < shape[a]]
    grid_axes.sort(key=lambda a: -_cdiv(shape[a], block[a]))  # largest first
    if grid_axes:
        grid = tuple(_cdiv(shape[a], block[a]) for a in grid_axes)
    else:
        grid = (1,)

    block = tuple(block)
    out_block = tuple(block[p] for p in perm)
    slab_bytes = math.prod(block) * itemsize
    # in + out blocks, each double-buffered, plus headroom for scratch.
    vmem_limit = min(int(0.9 * cap), max(vmem_limit, 4 * slab_bytes + (4 << 20)))

    def in_index_map(*gids):
        idx = [0] * ndim
        for g, a in zip(gids, grid_axes):
            idx[a] = g
        return tuple(idx)

    def out_index_map(*gids):
        idx = [0] * ndim
        for g, a in zip(gids, grid_axes):
            idx[a] = g
        return tuple(idx[p] for p in perm)

    if is_minor_swap:
        kernel = _swap_minor_kernel
    else:
        kernel = functools.partial(
            _swap_sublane_leading_kernel,
            d0=d0, unroll=block[d0], mid_axes=tuple(mid_axes))

    total_bytes = int(x.size) * itemsize
    return pl.pallas_call(
        kernel,
        out_shape=jax.ShapeDtypeStruct(out_shape, x.dtype),
        grid=grid,
        in_specs=[pl.BlockSpec(block, in_index_map)],
        out_specs=pl.BlockSpec(out_block, out_index_map),
        compiler_params=pltpu.CompilerParams(
            dimension_semantics=("parallel",) * len(grid),
            vmem_limit_bytes=int(vmem_limit),
        ),
        cost_estimate=pl.CostEstimate(
            flops=0, transcendentals=0, bytes_accessed=2 * total_bytes),
    )(x)


# ---------------------------------------------------------------------------
# Public wrapper: torch.transpose(x, dim0, dim1)
# ---------------------------------------------------------------------------
def transposer(x, dim0, dim1, *, block_budget_bytes=None):
    """Pallas TPU implementation of torch.transpose(x, dim0, dim1)."""
    ndim = x.ndim
    d0 = dim0 % ndim
    d1 = dim1 % ndim
    if d0 == d1:
        return x
    if d0 > d1:
        d0, d1 = d1, d0

    if d1 < ndim - 2:
        # Pure leading-dim swap: fold untouched trailing dims into one
        # lane-dense minor dim (free layout plumbing), swap, unfold.
        folded = x.reshape(x.shape[:d1 + 1] + (-1,))
        y = _transpose_core(folded, d0, d1, block_budget_bytes)
        out_shape = list(x.shape)
        out_shape[d0], out_shape[d1] = out_shape[d1], out_shape[d0]
        return y.reshape(tuple(out_shape))

    if d1 == ndim - 1 and d0 < ndim - 2:
        # Leading <-> lane swap: no single safe in-register transpose, so use
        # swap(d0,n-2) o swap(n-2,n-1) o swap(d0,n-2) (three supported passes).
        # TODO(synk): fuse into one pass once a general mixed leading<->lane
        # in-register transpose is available in the Mosaic lowering.
        y = _transpose_core(x, d0, ndim - 2, block_budget_bytes)
        y = _transpose_core(y, ndim - 2, ndim - 1, block_budget_bytes)
        return _transpose_core(y, d0, ndim - 2, block_budget_bytes)

    return _transpose_core(x, d0, d1, block_budget_bytes)


if __name__ == "__main__":
    key = jax.random.PRNGKey(0)
    ks = jax.random.split(key, 6)

    # 1) Swap the last two dims (seq <-> hidden).
    x1 = jax.random.normal(ks[0], (2, 8, 32), dtype=jnp.float32)
    out = jax.block_until_ready(transposer(x1, 1, 2))
    ref = jnp.swapaxes(x1, 1, 2)
    assert out.shape == ref.shape and jnp.array_equal(out, ref), "case 1"

    #    Same swap via negative dims.
    out = jax.block_until_ready(transposer(x1, -2, -1))
    assert jnp.array_equal(out, ref), "case 1b"

    # 2) Swap two leading dims of an NCHW tensor (trailing dims folded lane-dense).
    x2 = jax.random.normal(ks[1], (2, 4, 16, 16), dtype=jnp.float32)
    out = jax.block_until_ready(transposer(x2, 0, 1))
    assert jnp.array_equal(out, jnp.swapaxes(x2, 0, 1)), "case 2"

    # 3) Swap a leading dim with the second-minor dim (C <-> H).
    out = jax.block_until_ready(transposer(x2, 1, 2))
    assert jnp.array_equal(out, jnp.swapaxes(x2, 1, 2)), "case 3"

    # 4) Minor-dim transpose with a tiny budget to force 128-aligned minor
    #    tiling and a multi-step, double-buffered "parallel" grid.
    x4 = jax.random.normal(ks[2], (2, 512, 512), dtype=jnp.float32)
    out = jax.block_until_ready(transposer(x4, 1, 2, block_budget_bytes=256 * 1024))
    assert jnp.array_equal(out, jnp.swapaxes(x4, 1, 2)), "case 4"

    # 5) Ragged (non-divisor) leading-axis blocking (batch=3, block=2).
    x5 = jax.random.normal(ks[3], (3, 8, 128), dtype=jnp.float32)
    out = jax.block_until_ready(transposer(x5, 1, 2, block_budget_bytes=8 * 1024))
    assert jnp.array_equal(out, jnp.swapaxes(x5, 1, 2)), "case 5"

    # 6) Swap a leading dim with the last (lane) dim -> 3-pass decomposition.
    x6 = jax.random.normal(ks[4], (2, 4, 8, 128), dtype=jnp.float32)
    out = jax.block_until_ready(transposer(x6, 1, 3))
    assert jnp.array_equal(out, jnp.swapaxes(x6, 1, 3)), "case 6"

    # 7) Rank-5 leading swap with a mid axis (exercises fold + mid handling).
    x7 = jax.random.normal(ks[5], (2, 3, 4, 2, 64), dtype=jnp.float32)
    out = jax.block_until_ready(transposer(x7, 0, 2))
    assert jnp.array_equal(out, jnp.swapaxes(x7, 0, 2)), "case 7"

    print("KERNEL_OK")
</pallas_src>

<mosaic_0001>
module attributes {stable_mosaic.version = 11 : i64} {
  func.func @_swap_minor_kernel(%arg0: i32, %arg1: memref<2x8x32xf32, #tpu.memory_space<vmem>>, %arg2: memref<2x32x8xf32, #tpu.memory_space<vmem>>) attributes {dimension_semantics = [#tpu.dimension_semantics<parallel>], iteration_bounds = array<i64: 1>, scalar_prefetch = 0 : i64, scratch_operands = 0 : i64, tpu.core_type = #tpu.core_type<tc>, window_params = [{pipeline_mode = #tpu.pipeline_mode<synchronous>, transform_indices = @transform_0, window_bounds = array<i64: 2, 8, 32>}, {pipeline_mode = #tpu.pipeline_mode<synchronous>, transform_indices = @transform_1, window_bounds = array<i64: 2, 32, 8>}]} {
    %c0 = arith.constant 0 : index
    %c0_0 = arith.constant 0 : index
    %c0_1 = arith.constant 0 : index
    %0 = vector.load %arg1[%c0, %c0_0, %c0_1] : memref<2x8x32xf32, #tpu.memory_space<vmem>>, vector<2x8x32xf32>
    %1 = tpu.transpose %0, [0, 2, 1] : vector<2x8x32xf32> -> vector<2x32x8xf32>
    %c0_2 = arith.constant 0 : index
    %c0_3 = arith.constant 0 : index
    %c0_4 = arith.constant 0 : index
    %2 = vector.load %arg2[%c0_2, %c0_3, %c0_4] : memref<2x32x8xf32, #tpu.memory_space<vmem>>, vector<2x32x8xf32>
    tpu.vector_store %arg2[%c0_2, %c0_3, %c0_4], %1 {strides = array<i32>} : memref<2x32x8xf32, #tpu.memory_space<vmem>>, vector<2x32x8xf32>,
    return
  }
  func.func @transform_0(%arg0: i32) -> (i32, i32, i32) {
    %c0_i32 = arith.constant 0 : i32
    %c0_i32_0 = arith.constant 0 : i32
    %c0_i32_1 = arith.constant 0 : i32
    %c0_i32_2 = arith.constant 0 : i32
    return %c0_i32, %c0_i32_0, %c0_i32_1 : i32, i32, i32
  }
  func.func @transform_1(%arg0: i32) -> (i32, i32, i32) {
    %c0_i32 = arith.constant 0 : i32
    %c0_i32_0 = arith.constant 0 : i32
    %c0_i32_1 = arith.constant 0 : i32
    %c0_i32_2 = arith.constant 0 : i32
    return %c0_i32, %c0_i32_0, %c0_i32_1 : i32, i32, i32
  }
}

</mosaic_0001>

<llo_original>
// kernel: tpu_custom_call.1
$region0: #{tpu_custom_call.1}
  #allocation0 [shape = 'u32[]', space=smem, size = 0x4, offset = 0x4, fixed_abs, tag = 'smem constant byte address 0x4 - core index']
  #allocation1 [shape = 'u32[144,128]{1,0:T(1,128)}', space=vmem, size = 0x12000, scoped, tag = 'internal scratch']
  %s0 = inlined_call_operand.hbm [shape: f32[2,8,32], index: 0, kind: input, shape index: {}]
  %s1 = inlined_call_operand.vmem [shape: f32[2,32,8], index: 1, kind: output, shape index: {}]
  %s2 = sld [smem:[#allocation0]]
  $region18: #{tpu_custom_call.1} parent=0
    _
  %s4 = ssub.s32 1, %s2
  %s5 = scalar_select 0, %s4, %s2
  $region1: #{tpu_custom_call.1} parent=0
    #allocation2 [shape = 'u8[8192]{0}', space=vmem, size = 0x2000, scoped, tag = 'input window, operand 0, single buffered']
    #allocation3 [shape = 's32[1]{0}', space=sflag, size = 0x4, scoped, tag = 'scoped memory for tpu_custom_call.1']
    %6 = vsyncpa [#allocation3], 0
    // Predicated region
    $region2: #{tpu_custom_call.1} parent=1 // pred_check
      _
    $region3: #{tpu_custom_call.1} parent=1 // pred_check_branch
      %8 = sbr.rel (0) target = $region5
    $region4: #{tpu_custom_call.1} parent=1 // pred_region
      %s10 = ssub.s32 256, 256
      %11 = vsyncadd [#allocation3], %s10
      %s12 = sshll.u32 [#allocation2], 4
      %s13 = int_to_ptr.vmem [resolvable:$true] %s12
      %18 = dma.hbm_to_vmem [thread:$0]  %s0, 256, %s13, [#allocation3], 128, 128, 8
    $region5: #{tpu_custom_call.1} parent=1 // pred_fallthru
      _
    // Predicated region
    $region6: #{tpu_custom_call.1} parent=1 // pred_check
      _
    $region7: #{tpu_custom_call.1} parent=1 // pred_check_branch
      %20 = sbr.rel (0) target = $region9
    $region8: #{tpu_custom_call.1} parent=1 // pred_region
      %21 = dma.done [#allocation3], 256
    $region9: #{tpu_custom_call.1} parent=1 // pred_fallthru
      _
    %v22 = vld [vmem:[#allocation2] sm:$0xff]
    %v23 = vld [vmem:[#allocation2 + $0x8] sm:$0xff]
    %24 = vxpose.xlu0.b32.start [1/16] %v22, 128
    %25 = vxpose.xlu0.b32.cont [2/16] 0.0, 128
    %26 = vxpose.xlu0.b32.cont [3/16] 0.0, 128
    %27 = vxpose.xlu0.b32.cont [4/16] 0.0, 128
    %28 = vxpose.xlu0.b32.cont [5/16] 0.0, 128
    %29 = vxpose.xlu0.b32.cont [6/16] 0.0, 128
    %30 = vxpose.xlu0.b32.cont [7/16] 0.0, 128
    %31 = vxpose.xlu0.b32.cont [8/16] 0.0, 128
    %32 = vxpose.xlu0.b32.cont [9/16] 0.0, 128
    %33 = vxpose.xlu0.b32.cont [10/16] 0.0, 128
    %34 = vxpose.xlu0.b32.cont [11/16] 0.0, 128
    %35 = vxpose.xlu0.b32.cont [12/16] 0.0, 128
    %36 = vxpose.xlu0.b32.cont [13/16] 0.0, 128
    %37 = vxpose.xlu0.b32.cont [14/16] 0.0, 128
    %38 = vxpose.xlu0.b32.cont [15/16] 0.0, 128
    %39 = vxpose.xlu0.b32.end [16/16] 0.0, 128
    %v40 = vpop.trf.xlu0
    %v41 = vpop.trf.xlu0
    %v42 = vpop.trf.xlu0
    %v43 = vpop.trf.xlu0
    %v44 = vpop.trf.xlu0
    %v45 = vpop.trf.xlu0
    %v46 = vpop.trf.xlu0
    %v47 = vpop.trf.xlu0
    %v48 = vpop.trf.xlu0
    %v49 = vpop.trf.xlu0
    %v50 = vpop.trf.xlu0
    %v51 = vpop.trf.xlu0
    %v52 = vpop.trf.xlu0
    %v53 = vpop.trf.xlu0
    %v54 = vpop.trf.xlu0
    %v55 = vpop.trf.xlu0
    %56 = vxpose.xlu0.b32.start [1/16] %v23, 128
    %57 = vxpose.xlu0.b32.cont [2/16] 0.0, 128
    %58 = vxpose.xlu0.b32.cont [3/16] 0.0, 128
    %59 = vxpose.xlu0.b32.cont [4/16] 0.0, 128
    %60 = vxpose.xlu0.b32.cont [5/16] 0.0, 128
    %61 = vxpose.xlu0.b32.cont [6/16] 0.0, 128
    %62 = vxpose.xlu0.b32.cont [7/16] 0.0, 128
    %63 = vxpose.xlu0.b32.cont [8/16] 0.0, 128
    %64 = vxpose.xlu0.b32.cont [9/16] 0.0, 128
    %65 = vxpose.xlu0.b32.cont [10/16] 0.0, 128
    %66 = vxpose.xlu0.b32.cont [11/16] 0.0, 128
    %67 = vxpose.xlu0.b32.cont [12/16] 0.0, 128
    %68 = vxpose.xlu0.b32.cont [13/16] 0.0, 128
    %69 = vxpose.xlu0.b32.cont [14/16] 0.0, 128
    %70 = vxpose.xlu0.b32.cont [15/16] 0.0, 128
    %71 = vxpose.xlu0.b32.end [16/16] 0.0, 128
    %v72 = vpop.trf.xlu0
    %v73 = vpop.trf.xlu0
    %v74 = vpop.trf.xlu0
    %v75 = vpop.trf.xlu0
    %v76 = vpop.trf.xlu0
    %v77 = vpop.trf.xlu0
    %v78 = vpop.trf.xlu0
    %v79 = vpop.trf.xlu0
    %v80 = vpop.trf.xlu0
    %v81 = vpop.trf.xlu0
    %v82 = vpop.trf.xlu0
    %v83 = vpop.trf.xlu0
    %v84 = vpop.trf.xlu0
    %v85 = vpop.trf.xlu0
    %v86 = vpop.trf.xlu0
    %v87 = vpop.trf.xlu0
    %vm88 = vcmask 64512
    %89 = vst.msk [vmem:[%s1] sm:$0xff] %vm88, %v40
    %90 = vst.msk [vmem:[%s1 + $0x8] sm:$0xff] %vm88, %v41
    %91 = vst.msk [vmem:[%s1 + $0x10] sm:$0xff] %vm88, %v42
    %92 = vst.msk [vmem:[%s1 + $0x18] sm:$0xff] %vm88, %v43
    %93 = vst.msk [vmem:[%s1 + $0x20] sm:$0xff] %vm88, %v72
    %94 = vst.msk [vmem:[%s1 + $0x28] sm:$0xff] %vm88, %v73
    %95 = vst.msk [vmem:[%s1 + $0x30] sm:$0xff] %vm88, %v74
    %96 = vst.msk [vmem:[%s1 + $0x38] sm:$0xff] %vm88, %v75
    // Predicated region
    $region10: #{tpu_custom_call.1} parent=1 // pred_check
      _
    $region11: #{tpu_custom_call.1} parent=1 // pred_check_branch
      %98 = sbr.rel (0) target = $region13
    $region12: #{tpu_custom_call.1} parent=1 // pred_region
      _
    $region13: #{tpu_custom_call.1} parent=1 // pred_fallthru
      _
    // Predicated region
    $region14: #{tpu_custom_call.1} parent=1 // pred_check
      _
    $region15: #{tpu_custom_call.1} parent=1 // pred_check_branch
      %100 = sbr.rel (0) target = $region17
    $region16: #{tpu_custom_call.1} parent=1 // pred_region
      _
    $region17: #{tpu_custom_call.1} parent=1 // pred_fallthru
      _
    %101 = vsyncpa [#allocation3], 1

</llo_original>
